<compile_context>
chip_gen: v6e
topology: v6e:2x2x1
jax: 0.10.0
libtpu: 0.0.40
codegen_flags: <defaults>
</compile_context>

<pallas_src>
import jax
import jax.numpy as jnp
from jax.experimental import pallas as pl
from jax.experimental.pallas import tpu as pltpu

_NEG = jnp.float32(-1e30)   # fill for padded logits: never the max, exp -> 0
_MAX_TILE_M = 32768         # lanes per row tile (~1 MiB f32 logits at C_pad=8)


def _round_up(x, m):
    return (x + m - 1) // m * m


def _choose_tile(m):
    """Pick (TILE_M, M_pad) with TILE_M | M_pad, both multiples of 128."""
    m128 = _round_up(max(m, 1), 128)
    if m128 <= _MAX_TILE_M:
        return m128, m128
    # TODO(synk): sweep TILE_M / pl.Buffered(3) on v5e for the last 10-20%.
    return _MAX_TILE_M, _round_up(m128, _MAX_TILE_M)


def _ce_acc_kernel(ignore_ref, logits_ref, labels_ref, out_ref):
    """One row tile of masked-mean cross entropy + top-1 accuracy (%).

    ignore_ref: (1,) int32 in SMEM (scalar prefetch) -- ignore index.
    logits_ref: (C_pad, TILE_M) f32, classes on sublanes, rows on lanes.
    labels_ref: (1, TILE_M) int32, padded rows carry the ignore index.
    out_ref:    (8, 128) f32, resident accumulator (same block every tile).
                Final layout: [0, 0] = loss, [1, 0] = accuracy (%).
    """
    t = pl.program_id(0)
    nt = pl.num_programs(0)
    ignore = ignore_ref[0]

    sub = jax.lax.broadcasted_iota(jnp.int32, (8, 128), 0)
    lane0 = jax.lax.broadcasted_iota(jnp.int32, (8, 128), 1) == 0

    @pl.when(t == 0)
    def _():
        out_ref[...] = jnp.zeros_like(out_ref)

    logits = logits_ref[...]                         # (C, TM)
    labels = labels_ref[...]                         # (1, TM)
    C, TM = logits.shape

    class_ids = jax.lax.broadcasted_iota(jnp.int32, (C, TM), 0)

    # logit of the target class (ignored / padded rows never match -> 0)
    picked = jnp.sum(jnp.where(class_ids == labels, logits, 0.0),
                     axis=0, keepdims=True)                          # (1, TM)

    # numerically stable log-sum-exp over classes (sublane reduce, C <= 8ish)
    col_max = jnp.max(logits, axis=0, keepdims=True)                 # (1, TM)
    lse = jnp.log(jnp.sum(jnp.exp(logits - col_max),
                          axis=0, keepdims=True)) + col_max          # (1, TM)
    nll = lse - picked                                               # (1, TM)

    valid = (labels != ignore).astype(jnp.float32)                   # (1, TM)

    # first-occurrence argmax over classes == min class index hitting the max
    # (kept instead of the cheaper `picked >= col_max` to match torch argmax
    #  tie-breaking exactly)
    pred = jnp.min(jnp.where(logits == col_max, class_ids, jnp.int32(C)),
                   axis=0, keepdims=True)                            # (1, TM)
    correct = (pred == labels).astype(jnp.float32)

    # padded lanes: nll is ~-1e30 (finite) and valid is 0 -> contributes 0.
    s_nll = jnp.sum(nll * valid)
    s_cnt = jnp.sum(valid)
    s_cor = jnp.sum(correct * valid)

    contrib = jnp.where((sub == 0) & lane0, s_nll,
              jnp.where((sub == 1) & lane0, s_cnt,
              jnp.where((sub == 2) & lane0, s_cor, 0.0)))
    out_ref[...] = out_ref[...] + contrib

    @pl.when(t == nt - 1)
    def _():
        acc = out_ref[...]
        # only lane 0 of rows 0..2 is nonzero, so masked full-vreg sums
        # extract the three scalars without scalar VMEM loads.
        tot_nll = jnp.sum(jnp.where(sub == 0, acc, 0.0))
        tot_cnt = jnp.sum(jnp.where(sub == 1, acc, 0.0))
        tot_cor = jnp.sum(jnp.where(sub == 2, acc, 0.0))
        inv = 1.0 / tot_cnt   # NaN when count == 0, matching torch CE (mean)
        loss = tot_nll * inv
        accv = jnp.where(tot_cnt > 0.0, 100.0 * tot_cor * inv,
                         0.0)  # mmdet/mmocr accuracy on an empty set -> 0
        out_ref[...] = jnp.where((sub == 0) & lane0, loss,
                       jnp.where((sub == 1) & lane0, accv, 0.0))


def ce_loss_and_acc(preds, labels, ignore_index):
    """Masked-mean CE loss + top-1 accuracy (%) for one head.

    preds: (M, C) float logits.  labels: (M,) int.  Returns (loss, acc)."""
    M, C = preds.shape
    c_pad = _round_up(max(C, 1), 8)
    tile_m, m_pad = _choose_tile(M)
    n_tiles = m_pad // tile_m

    # One fused pad+transpose copy per head (classes -> sublanes).
    logits = jnp.pad(preds.astype(jnp.float32).T,
                     ((0, c_pad - C), (0, m_pad - M)),
                     constant_values=_NEG)                      # (c_pad, m_pad)
    lbl = jnp.pad(labels.astype(jnp.int32), (0, m_pad - M),
                  constant_values=ignore_index)[None, :]        # (1, m_pad)
    ignores = jnp.array([ignore_index], jnp.int32)

    bytes_accessed = c_pad * m_pad * 4 + m_pad * 4 + 8 * 128 * 4

    out = pl.pallas_call(
        _ce_acc_kernel,
        out_shape=jax.ShapeDtypeStruct((8, 128), jnp.float32),
        grid_spec=pltpu.PrefetchScalarGridSpec(
            num_scalar_prefetch=1,
            grid=(n_tiles,),
            in_specs=[
                pl.BlockSpec((c_pad, tile_m), lambda t, ign: (0, t)),
                pl.BlockSpec((1, tile_m), lambda t, ign: (0, t)),
            ],
            out_specs=pl.BlockSpec((8, 128), lambda t, ign: (0, 0)),
        ),
        compiler_params=pltpu.CompilerParams(
            dimension_semantics=("arbitrary",),   # row axis is a reduction
            vmem_limit_bytes=32 * 1024 * 1024,    # fits v5e/v6e/v7x budgets
        ),
        cost_estimate=pl.CostEstimate(
            flops=12 * c_pad * m_pad,
            transcendentals=c_pad * m_pad + m_pad,
            bytes_accessed=bytes_accessed,
        ),
    )(ignores, logits, lbl)
    return out[0, 0], out[1, 0]


class SDMGRLossPallas:
    """Pallas equivalent of mmocr SDMGRLoss.forward (no learnable params)."""

    def __init__(self, node_weight=1.0, edge_weight=1.0, ignore=-100):
        self.node_weight = node_weight
        self.edge_weight = edge_weight
        self.ignore = ignore

    def __call__(self, node_preds, edge_preds, gts):
        # Glue: replicate the gt slicing / flattening of the torch forward.
        node_gts = jnp.concatenate([g[:, 0] for g in gts]).astype(jnp.int32)
        edge_gts = jnp.concatenate(
            [g[:, 1:].reshape(-1) for g in gts]).astype(jnp.int32)

        # Two calls sharing one kernel: each head gets its own M_pad bucket,
        # so the (small) node head no longer pays the edge head's padding.
        loss_node, acc_node = ce_loss_and_acc(node_preds, node_gts,
                                              self.ignore)
        loss_edge, acc_edge = ce_loss_and_acc(edge_preds, edge_gts, -1)
        return dict(
            loss_node=self.node_weight * loss_node,
            loss_edge=self.edge_weight * loss_edge,
            acc_node=acc_node,
            acc_edge=acc_edge,
        )


if __name__ == "__main__":
    key = jax.random.PRNGKey(0)
    k1, k2, k3 = jax.random.split(key, 3)

    # Two "images", each with 8 text nodes.  gt[i] has shape (n_i, 1 + n_i):
    # column 0 = node class, columns 1: = dense edge labels (n_i x n_i).
    n_per_img = 8
    num_imgs = 2
    num_node_classes = 4
    num_edge_classes = 2
    ignore = -100

    gts = []
    gt_keys = jax.random.split(k1, num_imgs)
    for i in range(num_imgs):
        ka, kb, kc, kd = jax.random.split(gt_keys[i], 4)
        node_lbl = jax.random.randint(ka, (n_per_img,), 0, num_node_classes)
        # mark a couple of nodes as ignored
        node_mask = jax.random.bernoulli(kb, 0.25, (n_per_img,))
        node_lbl = jnp.where(node_mask, ignore, node_lbl)
        edge_lbl = jax.random.randint(kc, (n_per_img, n_per_img), 0,
                                      num_edge_classes)
        # mark some edges as ignored (-1)
        edge_mask = jax.random.bernoulli(kd, 0.3, (n_per_img, n_per_img))
        edge_lbl = jnp.where(edge_mask, -1, edge_lbl)
        gt = jnp.concatenate([node_lbl[:, None], edge_lbl],
                             axis=1).astype(jnp.int32)
        gts.append(gt)

    total_nodes = num_imgs * n_per_img                # 16
    total_edges = num_imgs * n_per_img * n_per_img    # 128

    node_preds = jax.random.normal(k2, (total_nodes, num_node_classes),
                                   jnp.float32)
    edge_preds = jax.random.normal(k3, (total_edges, num_edge_classes),
                                   jnp.float32)

    loss_mod = SDMGRLossPallas(node_weight=1.0, edge_weight=1.0, ignore=ignore)
    out = loss_mod(node_preds, edge_preds, gts)
    out = jax.tree_util.tree_map(jax.block_until_ready, out)

    # sanity: all outputs are finite scalars
    for v in out.values():
        assert v.shape == () and bool(jnp.isfinite(v)), v

    print("KERNEL_OK")
</pallas_src>

<mosaic_0001>
module attributes {stable_mosaic.version = 11 : i64} {
  func.func @_ce_acc_kernel(%arg0: i32, %arg1: memref<1xi32, #tpu.memory_space<smem>>, %arg2: memref<8x128xf32, #tpu.memory_space<vmem>>, %arg3: memref<1x128xi32, #tpu.memory_space<vmem>>, %arg4: memref<8x128xf32, #tpu.memory_space<vmem>>) attributes {dimension_semantics = [#tpu.dimension_semantics<arbitrary>], iteration_bounds = array<i64: 1>, scalar_prefetch = 1 : i64, scratch_operands = 0 : i64, tpu.core_type = #tpu.core_type<tc>, window_params = [{transform_indices = @transform_0, window_bounds = array<i64: 8, 128>}, {transform_indices = @transform_1, window_bounds = array<i64: 1, 128>}, {pipeline_mode = #tpu.pipeline_mode<synchronous>, transform_indices = @transform_2, window_bounds = array<i64: 8, 128>}]} {
    %c0 = arith.constant 0 : index
    %0 = memref.load %arg1[%c0] : memref<1xi32, #tpu.memory_space<smem>>
    %1 = tpu.iota {dimensions = array<i32: 0>} : vector<8x128xi32>
    %2 = tpu.iota {dimensions = array<i32: 1>} : vector<8x128xi32>
    %c0_i32 = arith.constant 0 : i32
    %3 = vector.broadcast %c0_i32 : i32 to vector<8x128xi32>
    %4 = arith.cmpi eq, %2, %3 : vector<8x128xi32>
    %c0_i32_0 = arith.constant 0 : i32
    %5 = arith.cmpi eq, %arg0, %c0_i32_0 : i32
    %6 = arith.extui %5 : i1 to i32
    %c0_i32_1 = arith.constant 0 : i32
    %7 = arith.cmpi ne, %6, %c0_i32_1 : i32
    scf.if %7 {
      %cst_21 = arith.constant 0.000000e+00 : f32
      %76 = vector.broadcast %cst_21 : f32 to vector<8x128xf32>
      %c0_22 = arith.constant 0 : index
      %c0_23 = arith.constant 0 : index
      %77 = vector.load %arg4[%c0_22, %c0_23] : memref<8x128xf32, #tpu.memory_space<vmem>>, vector<8x128xf32>
      tpu.vector_store %arg4[%c0_22, %c0_23], %76 {strides = array<i32>} : memref<8x128xf32, #tpu.memory_space<vmem>>, vector<8x128xf32>,
    } else {
    }
    %c0_2 = arith.constant 0 : index
    %c0_3 = arith.constant 0 : index
    %8 = vector.load %arg2[%c0_2, %c0_3] : memref<8x128xf32, #tpu.memory_space<vmem>>, vector<8x128xf32>
    %c0_4 = arith.constant 0 : index
    %c0_5 = arith.constant 0 : index
    %9 = vector.load %arg3[%c0_4, %c0_5] : memref<1x128xi32, #tpu.memory_space<vmem>>, vector<1x128xi32>
    %10 = tpu.iota {dimensions = array<i32: 0>} : vector<8x128xi32>
    %11 = vector.broadcast %9 : vector<1x128xi32> to vector<8x128xi32>
    %12 = arith.cmpi eq, %10, %11 : vector<8x128xi32>
    %cst = arith.constant 0.000000e+00 : f32
    %13 = vector.broadcast %cst : f32 to vector<8x128xf32>
    %14 = arith.select %12, %8, %13 : vector<8x128xi1>, vector<8x128xf32>
    %cst_6 = arith.constant dense<0.000000e+00> : vector<128xf32>
    %15 = vector.multi_reduction <add>, %14, %cst_6 [0] : vector<8x128xf32> to vector<128xf32>
    %16 = vector.shape_cast %15 : vector<128xf32> to vector<1x128xf32>
    %cst_7 = arith.constant dense<0xFF800000> : vector<128xf32>
    %17 = vector.multi_reduction <maximumf>, %8, %cst_7 [0] : vector<8x128xf32> to vector<128xf32>
    %18 = vector.shape_cast %17 : vector<128xf32> to vector<1x128xf32>
    %19 = vector.broadcast %18 : vector<1x128xf32> to vector<8x128xf32>
    %20 = arith.subf %8, %19 : vector<8x128xf32>
    %21 = math.exp %20 : vector<8x128xf32>
    %cst_8 = arith.constant dense<0.000000e+00> : vector<128xf32>
    %22 = vector.multi_reduction <add>, %21, %cst_8 [0] : vector<8x128xf32> to vector<128xf32>
    %23 = vector.shape_cast %22 : vector<128xf32> to vector<1x128xf32>
    %24 = math.log %23 : vector<1x128xf32>
    %25 = arith.addf %24, %18 : vector<1x128xf32>
    %26 = arith.subf %25, %16 : vector<1x128xf32>
    %27 = vector.broadcast %0 : i32 to vector<1x128xi32>
    %28 = arith.cmpi ne, %9, %27 : vector<1x128xi32>
    %29 = arith.extui %28 : vector<1x128xi1> to vector<1x128xi32>
    %30 = arith.sitofp %29 : vector<1x128xi32> to vector<1x128xf32>
    %31 = vector.broadcast %18 : vector<1x128xf32> to vector<8x128xf32>
    %32 = arith.cmpf oeq, %8, %31 : vector<8x128xf32>
    %c8_i32 = arith.constant 8 : i32
    %33 = vector.broadcast %c8_i32 : i32 to vector<8x128xi32>
    %34 = arith.select %32, %10, %33 : vector<8x128xi1>, vector<8x128xi32>
    %cst_9 = arith.constant dense<2147483647> : vector<128xi32>
    %35 = vector.multi_reduction <minsi>, %34, %cst_9 [0] : vector<8x128xi32> to vector<128xi32>
    %36 = vector.shape_cast %35 : vector<128xi32> to vector<1x128xi32>
    %37 = arith.cmpi eq, %36, %9 : vector<1x128xi32>
    %38 = arith.extui %37 : vector<1x128xi1> to vector<1x128xi32>
    %39 = arith.sitofp %38 : vector<1x128xi32> to vector<1x128xf32>
    %40 = arith.mulf %26, %30 : vector<1x128xf32>
    %41 = vector.shape_cast %40 : vector<1x128xf32> to vector<1x1x128xf32>
    %cst_10 = arith.constant dense<0.000000e+00> : vector<1xf32>
    %42 = vector.multi_reduction <add>, %41, %cst_10 [1, 2] : vector<1x1x128xf32> to vector<1xf32>
    %43 = vector.shape_cast %42 : vector<1xf32> to vector<1x1x1xf32>
    %44 = vector.extract %43[0, 0, 0] : f32 from vector<1x1x1xf32>
    %45 = vector.shape_cast %30 : vector<1x128xf32> to vector<1x1x128xf32>
    %cst_11 = arith.constant dense<0.000000e+00> : vector<1xf32>
    %46 = vector.multi_reduction <add>, %45, %cst_11 [1, 2] : vector<1x1x128xf32> to vector<1xf32>
    %47 = vector.shape_cast %46 : vector<1xf32> to vector<1x1x1xf32>
    %48 = vector.extract %47[0, 0, 0] : f32 from vector<1x1x1xf32>
    %49 = arith.mulf %39, %30 : vector<1x128xf32>
    %50 = vector.shape_cast %49 : vector<1x128xf32> to vector<1x1x128xf32>
    %cst_12 = arith.constant dense<0.000000e+00> : vector<1xf32>
    %51 = vector.multi_reduction <add>, %50, %cst_12 [1, 2] : vector<1x1x128xf32> to vector<1xf32>
    %52 = vector.shape_cast %51 : vector<1xf32> to vector<1x1x1xf32>
    %53 = vector.extract %52[0, 0, 0] : f32 from vector<1x1x1xf32>
    %c0_i32_13 = arith.constant 0 : i32
    %54 = vector.broadcast %c0_i32_13 : i32 to vector<8x128xi32>
    %55 = arith.cmpi eq, %1, %54 : vector<8x128xi32>
    %56 = arith.andi %55, %4 : vector<8x128xi1>
    %c1_i32 = arith.constant 1 : i32
    %57 = vector.broadcast %c1_i32 : i32 to vector<8x128xi32>
    %58 = arith.cmpi eq, %1, %57 : vector<8x128xi32>
    %59 = arith.andi %58, %4 : vector<8x128xi1>
    %c2_i32 = arith.constant 2 : i32
    %60 = vector.broadcast %c2_i32 : i32 to vector<8x128xi32>
    %61 = arith.cmpi eq, %1, %60 : vector<8x128xi32>
    %62 = arith.andi %61, %4 : vector<8x128xi1>
    %cst_14 = arith.constant 0.000000e+00 : f32
    %63 = vector.broadcast %53 : f32 to vector<8x128xf32>
    %64 = vector.broadcast %cst_14 : f32 to vector<8x128xf32>
    %65 = arith.select %62, %63, %64 : vector<8x128xi1>, vector<8x128xf32>
    %66 = vector.broadcast %48 : f32 to vector<8x128xf32>
    %67 = arith.select %59, %66, %65 : vector<8x128xi1>, vector<8x128xf32>
    %68 = vector.broadcast %44 : f32 to vector<8x128xf32>
    %69 = arith.select %56, %68, %67 : vector<8x128xi1>, vector<8x128xf32>
    %c0_15 = arith.constant 0 : index
    %c0_16 = arith.constant 0 : index
    %70 = vector.load %arg4[%c0_15, %c0_16] : memref<8x128xf32, #tpu.memory_space<vmem>>, vector<8x128xf32>
    %71 = arith.addf %70, %69 : vector<8x128xf32>
    %c0_17 = arith.constant 0 : index
    %c0_18 = arith.constant 0 : index
    %72 = vector.load %arg4[%c0_17, %c0_18] : memref<8x128xf32, #tpu.memory_space<vmem>>, vector<8x128xf32>
    tpu.vector_store %arg4[%c0_17, %c0_18], %71 {strides = array<i32>} : memref<8x128xf32, #tpu.memory_space<vmem>>, vector<8x128xf32>,
    %c0_i32_19 = arith.constant 0 : i32
    %73 = arith.cmpi eq, %arg0, %c0_i32_19 : i32
    %74 = arith.extui %73 : i1 to i32
    %c0_i32_20 = arith.constant 0 : i32
    %75 = arith.cmpi ne, %74, %c0_i32_20 : i32
    scf.if %75 {
      %c0_21 = arith.constant 0 : index
      %c0_22 = arith.constant 0 : index
      %76 = vector.load %arg4[%c0_21, %c0_22] : memref<8x128xf32, #tpu.memory_space<vmem>>, vector<8x128xf32>
      %c0_i32_23 = arith.constant 0 : i32
      %77 = vector.broadcast %c0_i32_23 : i32 to vector<8x128xi32>
      %78 = arith.cmpi eq, %1, %77 : vector<8x128xi32>
      %cst_24 = arith.constant 0.000000e+00 : f32
      %79 = vector.broadcast %cst_24 : f32 to vector<8x128xf32>
      %80 = arith.select %78, %76, %79 : vector<8x128xi1>, vector<8x128xf32>
      %81 = vector.shape_cast %80 : vector<8x128xf32> to vector<1x8x128xf32>
      %cst_25 = arith.constant dense<0.000000e+00> : vector<1xf32>
      %82 = vector.multi_reduction <add>, %81, %cst_25 [1, 2] : vector<1x8x128xf32> to vector<1xf32>
      %83 = vector.shape_cast %82 : vector<1xf32> to vector<1x1x1xf32>
      %84 = vector.extract %83[0, 0, 0] : f32 from vector<1x1x1xf32>
      %c1_i32_26 = arith.constant 1 : i32
      %85 = vector.broadcast %c1_i32_26 : i32 to vector<8x128xi32>
      %86 = arith.cmpi eq, %1, %85 : vector<8x128xi32>
      %cst_27 = arith.constant 0.000000e+00 : f32
      %87 = vector.broadcast %cst_27 : f32 to vector<8x128xf32>
      %88 = arith.select %86, %76, %87 : vector<8x128xi1>, vector<8x128xf32>
      %89 = vector.shape_cast %88 : vector<8x128xf32> to vector<1x8x128xf32>
      %cst_28 = arith.constant dense<0.000000e+00> : vector<1xf32>
      %90 = vector.multi_reduction <add>, %89, %cst_28 [1, 2] : vector<1x8x128xf32> to vector<1xf32>
      %91 = vector.shape_cast %90 : vector<1xf32> to vector<1x1x1xf32>
      %92 = vector.extract %91[0, 0, 0] : f32 from vector<1x1x1xf32>
      %c2_i32_29 = arith.constant 2 : i32
      %93 = vector.broadcast %c2_i32_29 : i32 to vector<8x128xi32>
      %94 = arith.cmpi eq, %1, %93 : vector<8x128xi32>
      %cst_30 = arith.constant 0.000000e+00 : f32
      %95 = vector.broadcast %cst_30 : f32 to vector<8x128xf32>
      %96 = arith.select %94, %76, %95 : vector<8x128xi1>, vector<8x128xf32>
      %97 = vector.shape_cast %96 : vector<8x128xf32> to vector<1x8x128xf32>
      %cst_31 = arith.constant dense<0.000000e+00> : vector<1xf32>
      %98 = vector.multi_reduction <add>, %97, %cst_31 [1, 2] : vector<1x8x128xf32> to vector<1xf32>
      %99 = vector.shape_cast %98 : vector<1xf32> to vector<1x1x1xf32>
      %100 = vector.extract %99[0, 0, 0] : f32 from vector<1x1x1xf32>
      %cst_32 = arith.constant 1.000000e+00 : f32
      %101 = arith.divf %cst_32, %92 : f32
      %102 = arith.mulf %84, %101 : f32
      %cst_33 = arith.constant 0.000000e+00 : f32
      %103 = arith.cmpf ogt, %92, %cst_33 : f32
      %cst_34 = arith.constant 1.000000e+02 : f32
      %104 = arith.mulf %cst_34, %100 : f32
      %105 = arith.mulf %104, %101 : f32
      %cst_35 = arith.constant 0.000000e+00 : f32
      %106 = arith.select %103, %105, %cst_35 : f32
      %c0_i32_36 = arith.constant 0 : i32
      %107 = vector.broadcast %c0_i32_36 : i32 to vector<8x128xi32>
      %108 = arith.cmpi eq, %1, %107 : vector<8x128xi32>
      %109 = arith.andi %108, %4 : vector<8x128xi1>
      %c1_i32_37 = arith.constant 1 : i32
      %110 = vector.broadcast %c1_i32_37 : i32 to vector<8x128xi32>
      %111 = arith.cmpi eq, %1, %110 : vector<8x128xi32>
      %112 = arith.andi %111, %4 : vector<8x128xi1>
      %cst_38 = arith.constant 0.000000e+00 : f32
      %113 = vector.broadcast %106 : f32 to vector<8x128xf32>
      %114 = vector.broadcast %cst_38 : f32 to vector<8x128xf32>
      %115 = arith.select %112, %113, %114 : vector<8x128xi1>, vector<8x128xf32>
      %116 = vector.broadcast %102 : f32 to vector<8x128xf32>
      %117 = arith.select %109, %116, %115 : vector<8x128xi1>, vector<8x128xf32>
      %c0_39 = arith.constant 0 : index
      %c0_40 = arith.constant 0 : index
      %118 = vector.load %arg4[%c0_39, %c0_40] : memref<8x128xf32, #tpu.memory_space<vmem>>, vector<8x128xf32>
      tpu.vector_store %arg4[%c0_39, %c0_40], %117 {strides = array<i32>} : memref<8x128xf32, #tpu.memory_space<vmem>>, vector<8x128xf32>,
    } else {
    }
    return
  }
  func.func @transform_0(%arg0: i32, %arg1: memref<1xi32, #tpu.memory_space<smem>>) -> (i32, i32) {
    %c0_i32 = arith.constant 0 : i32
    %c0_i32_0 = arith.constant 0 : i32
    return %c0_i32, %arg0 : i32, i32
  }
  func.func @transform_1(%arg0: i32, %arg1: memref<1xi32, #tpu.memory_space<smem>>) -> (i32, i32) {
    %c0_i32 = arith.constant 0 : i32
    %c0_i32_0 = arith.constant 0 : i32
    return %c0_i32, %arg0 : i32, i32
  }
  func.func @transform_2(%arg0: i32, %arg1: memref<1xi32, #tpu.memory_space<smem>>) -> (i32, i32) {
    %c0_i32 = arith.constant 0 : i32
    %c0_i32_0 = arith.constant 0 : i32
    %c0_i32_1 = arith.constant 0 : i32
    return %c0_i32, %c0_i32_0 : i32, i32
  }
}

</mosaic_0001>

<llo_original>
// kernel: tpu_custom_call.1
$region0: #{tpu_custom_call.1}
  #allocation0 [shape = 'u32[]', space=smem, size = 0x4, offset = 0x4, fixed_abs, tag = 'smem constant byte address 0x4 - core index']
  #allocation1 [shape = 'u32[144,128]{1,0:T(1,128)}', space=vmem, size = 0x12000, scoped, tag = 'internal scratch']
  #allocation2 [shape = 's32[1]{0}', space=sflag, size = 0x4, scoped, tag = 'scoped memory for tpu_custom_call.1']
  #allocation3 [shape = 's32[1]{0:T(128)S(6)}', space=smem, size = 0x200, scoped, tag = 'prefetched SMEM operand 0']
  %s0 = inlined_call_operand.<no memory space> [shape: s32[1], index: 0, kind: input, shape index: {}]
  %s1 = inlined_call_operand.hbm [shape: f32[8,128], index: 1, kind: input, shape index: {}]
  %s2 = inlined_call_operand.vmem [shape: s32[1,128], index: 2, kind: input, shape index: {}]
  %s3 = inlined_call_operand.hbm [shape: f32[8,128], index: 3, kind: output, shape index: {}]
  %s4 = sld [smem:[#allocation0]]
  $region30: #{tpu_custom_call.1} parent=0
    _
  %s6 = ssub.s32 1, %s4
  %s7 = scalar_select 0, %s6, %s4
  %8 = sst [smem:[#allocation3]] %s0
  $region1: #{tpu_custom_call.1} parent=0
    #allocation4 [shape = 'u8[4096]{0}', space=vmem, size = 0x1000, scoped, tag = 'input window, operand 1, single buffered']
    #allocation5 [shape = 's32[1]{0}', space=sflag, size = 0x4, scoped, tag = 'scoped memory for tpu_custom_call.1']
    #allocation6 [shape = 's32[1]{0}', space=sflag, size = 0x4, scoped, tag = 'scoped memory for tpu_custom_call.1']
    #allocation7 [shape = 'u8[4096]{0}', space=vmem, size = 0x1000, scoped, tag = 'output window, operand 0, single buffered']
    %9 = vsyncpa [#allocation5], 0
    %10 = vsyncpa [#allocation6], 0
    // Predicated region
    $region2: #{tpu_custom_call.1} parent=1 // pred_check
      _
    $region3: #{tpu_custom_call.1} parent=1 // pred_check_branch
      %12 = sbr.rel (0) target = $region5
    $region4: #{tpu_custom_call.1} parent=1 // pred_region
      %s14 = ssub.s32 128, 128
      %15 = vsyncadd [#allocation5], %s14
      %s17 = sshll.u32 [#allocation4], 4
      %s18 = int_to_ptr.vmem [resolvable:$true] %s17
      %20 = dma.hbm_to_vmem [thread:$0]  %s1, 128, %s18, [#allocation5]
    $region5: #{tpu_custom_call.1} parent=1 // pred_fallthru
      _
    // Predicated region
    $region6: #{tpu_custom_call.1} parent=1 // pred_check
      _
    $region7: #{tpu_custom_call.1} parent=1 // pred_check_branch
      %22 = sbr.rel (0) target = $region9
    $region8: #{tpu_custom_call.1} parent=1 // pred_region
      _
    $region9: #{tpu_custom_call.1} parent=1 // pred_fallthru
      _
    // Predicated region
    $region10: #{tpu_custom_call.1} parent=1 // pred_check
      _
    $region11: #{tpu_custom_call.1} parent=1 // pred_check_branch
      %24 = sbr.rel (0) target = $region13
    $region12: #{tpu_custom_call.1} parent=1 // pred_region
      %25 = dma.done [#allocation5], 128
    $region13: #{tpu_custom_call.1} parent=1 // pred_fallthru
      _
    %s26 = sld [smem:[#allocation3]]
    %v27 = vlaneseq
    %v28 = vshrl.u32 %v27, 7
    %v29 = vlaneseq
    %v30 = vand.u32 %v29, 127
    %vm31 = vcmp.eq.s32.totalorder %v30, 0
    %p32 = scmp.eq.s32.totalorder 0, 0
    // Predicated region
    $region14: #{tpu_custom_call.1} parent=1 // pred_check
      %p33 = pneg %p32
    $region15: #{tpu_custom_call.1} parent=1 // pred_check_branch
      %35 = sbr.rel (%p33) target = $region17
    $region16: #{tpu_custom_call.1} parent=1 // pred_region
      %36 = vst [vmem:[#allocation7] sm:$0xff] 0.0
    $region17: #{tpu_custom_call.1} parent=1 // pred_fallthru
      _
    %v37 = vld [vmem:[#allocation4] sm:$0xff]
    %v38 = vld [vmem:[%s2] sm:$0x1]
    %v39 = vlaneseq
    %v40 = vshrl.u32 %v39, 7
    %v41 = vsub.s32 0, %v40
    %v42 = vrot.slane %v38, %v41
    %vm43 = vcmp.eq.s32.totalorder %v28, %v42
    %v44 = vsel %vm43, %v37, 0.0
    %v45 = vrot.slane %v44, 4
    %v46 = vadd.f32 %v44, %v45
    %v47 = vrot.slane %v46, 2
    %v48 = vadd.f32 %v46, %v47
    %v49 = vrot.slane %v48, 1
    %v50 = vadd.f32 %v48, %v49
    %v51 = vrot.slane %v37, 4
    %v52 = vmax.f32 %v37, %v51
    %v53 = vrot.slane %v52, 2
    %v54 = vmax.f32 %v52, %v53
    %v55 = vrot.slane %v54, 1
    %v56 = vmax.f32 %v54, %v55
    %v57 = vsub.f32 %v37, %v56
    %v58 = vmul.f32 %v57, 1.442695
    %v59 = vpow.pop %v58
    %v60 = vrot.slane %v59, 4
    %v61 = vadd.f32 %v59, %v60
    %v62 = vrot.slane %v61, 2
    %v63 = vadd.f32 %v61, %v62
    %v64 = vrot.slane %v63, 1
    %v65 = vadd.f32 %v63, %v64
    %v66 = vlog2.pop %v65
    %v67 = vmul.f32 %v66, 0.6931472
    %v68 = vadd.f32 %v67, %v56
    %v69 = vsub.f32 %v68, %v50
    %v70 = vstv %s26
    %vm71 = vcmp.ne.s32.totalorder %v38, %v70
    %v72 = vsel %vm71, 1, 0
    %v73 = vcvt.s32.f32 %v72
    %vm74 = vcmp.eq.f32.partialorder %v37, %v56
    %v75 = vsel %vm74, %v28, 8
    %v76 = vrot.slane %v75, 4
    %vm77 = vcmp.lt.s32.totalorder %v75, %v76
    %v78 = vsel %vm77, %v75, %v76
    %v79 = vrot.slane %v78, 2
    %vm80 = vcmp.lt.s32.totalorder %v78, %v79
    %v81 = vsel %vm80, %v78, %v79
    %v82 = vrot.slane %v81, 1
    %vm83 = vcmp.lt.s32.totalorder %v81, %v82
    %v84 = vsel %vm83, %v81, %v82
    %vm85 = vcmp.eq.s32.totalorder %v84, %v38
    %v86 = vsel %vm85, 1, 0
    %v87 = vcvt.s32.f32 %v86
    %v88 = vmul.f32 %v69, %v73
    %vm89 = vcmask 1040384
    %v90 = vsel %vm89, %v88, 0.0
    %91 = vadd.xlane.f32.xlu0 %v90
    %v92 = vpop.xlane.xlu0 %91
    %v93 = vrot.slane %v92, 4
    %v94 = vadd.f32 %v92, %v93
    %v95 = vrot.slane %v94, 2
    %v96 = vadd.f32 %v94, %v95
    %v97 = vrot.slane %v96, 1
    %v98 = vadd.f32 %v96, %v97
    %s99 = vtos %v98
    %v100 = vsel %vm89, %v73, 0.0
    %101 = vadd.xlane.f32.xlu0 %v100
    %v102 = vpop.xlane.xlu0 %101
    %v103 = vrot.slane %v102, 4
    %v104 = vadd.f32 %v102, %v103
    %v105 = vrot.slane %v104, 2
    %v106 = vadd.f32 %v104, %v105
    %v107 = vrot.slane %v106, 1
    %v108 = vadd.f32 %v106, %v107
    %s109 = vtos %v108
    %v110 = vmul.f32 %v87, %v73
    %v111 = vsel %vm89, %v110, 0.0
    %112 = vadd.xlane.f32.xlu0 %v111
    %v113 = vpop.xlane.xlu0 %112
    %v114 = vrot.slane %v113, 4
    %v115 = vadd.f32 %v113, %v114
    %v116 = vrot.slane %v115, 2
    %v117 = vadd.f32 %v115, %v116
    %v118 = vrot.slane %v117, 1
    %v119 = vadd.f32 %v117, %v118
    %s120 = vtos %v119
    %vm121 = vcmp.eq.s32.totalorder %v28, 0
    %vm122 = vmand %vm121, %vm31
    %vm123 = vcmp.eq.s32.totalorder %v28, 1
    %vm124 = vmand %vm123, %vm31
    %vm125 = vcmp.eq.s32.totalorder %v28, 2
    %vm126 = vmand %vm125, %vm31
    %v127 = vstv %s120
    %v128 = vsel %vm126, %v127, 0.0
    %v129 = vstv %s109
    %v130 = vsel %vm124, %v129, %v128
    %v131 = vstv %s99
    %v132 = vsel %vm122, %v131, %v130
    %v133 = vld [vmem:[#allocation7] sm:$0xff]
    %v134 = vadd.f32 %v133, %v132
    %135 = vst [vmem:[#allocation7] sm:$0xff] %v134
    // Predicated region
    $region18: #{tpu_custom_call.1} parent=1 // pred_check
      %p136 = pneg %p32
    $region19: #{tpu_custom_call.1} parent=1 // pred_check_branch
      %138 = sbr.rel (%p136) target = $region21
    $region20: #{tpu_custom_call.1} parent=1 // pred_region
      %v139 = vld [vmem:[#allocation7] sm:$0xff]
      %v140 = vsel %vm121, %v139, 0.0
      %141 = vadd.xlane.f32.xlu0 %v140
      %v142 = vpop.xlane.xlu0 %141
      %v143 = vrot.slane %v142, 4
      %v144 = vadd.f32 %v142, %v143
      %v145 = vrot.slane %v144, 2
      %v146 = vadd.f32 %v144, %v145
      %v147 = vrot.slane %v146, 1
      %v148 = vadd.f32 %v146, %v147
      %s149 = vtos %v148
      %v150 = vsel %vm123, %v139, 0.0
      %151 = vadd.xlane.f32.xlu0 %v150
      %v152 = vpop.xlane.xlu0 %151
      %v153 = vrot.slane %v152, 4
      %v154 = vadd.f32 %v152, %v153
      %v155 = vrot.slane %v154, 2
      %v156 = vadd.f32 %v154, %v155
      %v157 = vrot.slane %v156, 1
      %v158 = vadd.f32 %v156, %v157
      %s159 = vtos %v158
      %v160 = vsel %vm125, %v139, 0.0
      %161 = vadd.xlane.f32.xlu0 %v160
      %v162 = vpop.xlane.xlu0 %161
      %v163 = vrot.slane %v162, 4
      %v164 = vadd.f32 %v162, %v163
      %v165 = vrot.slane %v164, 2
      %v166 = vadd.f32 %v164, %v165
      %v167 = vrot.slane %v166, 1
      %v168 = vadd.f32 %v166, %v167
      %s169 = vtos %v168
      %v170 = vstv %s159
      %v171 = vrcp.pop %v170
      %s172 = vtos %v171
      %s173 = smul.f32 %s149, %s172
      %p174 = scmp.gt.f32.partialorder %s159, 0.0
      %s175 = smul.f32 %s169, 100.0
      %s176 = smul.f32 %s175, %s172
      %s177 = scalar_select %p174, %s176, 0.0
      %v178 = vstv %s177
      %v179 = vsel %vm124, %v178, 0.0
      %v180 = vstv %s173
      %v181 = vsel %vm122, %v180, %v179
      %182 = vst [vmem:[#allocation7] sm:$0xff] %v181
    $region21: #{tpu_custom_call.1} parent=1 // pred_fallthru
      _
    // Predicated region
    $region22: #{tpu_custom_call.1} parent=1 // pred_check
      _
    $region23: #{tpu_custom_call.1} parent=1 // pred_check_branch
      %184 = sbr.rel (0) target = $region25
    $region24: #{tpu_custom_call.1} parent=1 // pred_region
      %s186 = ssub.s32 128, 128
      %187 = vsyncadd [#allocation6], %s186
      %s189 = sshll.u32 [#allocation7], 4
      %s190 = int_to_ptr.vmem [resolvable:$true] %s189
      %192 = dma.vmem_to_hbm [thread:$0]  %s190, 128, %s3, [#allocation6]
    $region25: #{tpu_custom_call.1} parent=1 // pred_fallthru
      _
    // Predicated region
    $region26: #{tpu_custom_call.1} parent=1 // pred_check
      _
    $region27: #{tpu_custom_call.1} parent=1 // pred_check_branch
      %194 = sbr.rel (0) target = $region29
    $region28: #{tpu_custom_call.1} parent=1 // pred_region
      %195 = dma.done [#allocation6], 128
    $region29: #{tpu_custom_call.1} parent=1 // pred_fallthru
      _
    %196 = vsyncpa [#allocation5], 1
    %197 = vsyncpa [#allocation6], 1

</llo_original>
